<compile_context>
chip_gen: v5e
topology: v5e:2x2
jax: 0.10.0
libtpu: 0.0.40
codegen_flags: <defaults>
</compile_context>

<pallas_src>
import jax
import jax.numpy as jnp
from jax import lax
from jax.experimental import pallas as pl
from jax.experimental.pallas import tpu as pltpu


# ---------------------------------------------------------------------------
# Prologue: phi / g 1x1 convs of x0, computed once, channel-major, bf16.
# ---------------------------------------------------------------------------
def _kv_proj_kernel(x0_ref, wpg_ref, bpg_ref, phi_ref, g1_ref):
    ci = phi_ref.shape[1]
    x = x0_ref[0]                                                   # (C, TN) f32
    # One stacked matmul: rows [0:Ci]=phi, [Ci:2Ci]=g, row [2Ci]=1.0 (zero weight
    # row + unit bias), so the attention kernel's PV dot also produces sum(p).
    pg1 = jnp.dot(wpg_ref[...], x,
                  preferred_element_type=jnp.float32) + bpg_ref[...]   # (2Ci+1, TN)
    phi_ref[0] = pg1[:ci, :].astype(phi_ref.dtype)                  # (Ci, TN)
    g1_ref[0] = pg1[ci:, :].astype(g1_ref.dtype)                    # (Ci+1, TN)


# ---------------------------------------------------------------------------
# Flash-style attention + output projection + residual.
# ---------------------------------------------------------------------------
def _attn_kernel(x1q_ref, phi_ref, g1_ref, x0q_ref,
                 wt_ref, bt_ref, ww_ref, bw_ref,
                 out_ref,
                 theta_s, m_s, acc_s):
    ki = pl.program_id(2)
    nk = pl.num_programs(2)

    @pl.when(ki == 0)
    def _init():
        # theta projection for this query tile, kept channel-major (Ci, TQ) so the
        # spatial axis is lane-dense; no transpose needed anywhere.
        theta = jnp.dot(wt_ref[...], x1q_ref[0],
                        preferred_element_type=jnp.float32) + bt_ref[...]
        theta_s[...] = theta
        m_s[...] = jnp.full(m_s.shape, -jnp.inf, dtype=jnp.float32)
        acc_s[...] = jnp.zeros(acc_s.shape, dtype=jnp.float32)

    phi_t = phi_ref[0]                                              # (Ci,   TK) bf16
    g1_t = g1_ref[0]                                                # (Ci+1, TK) bf16 (last row = 1)

    # Scores, KV-major: contract the tiny channel dim -> (TK, TQ).  Kept in f32
    # (K = Ci is tiny so the MXU cost is negligible; f32 is the robust path for
    # the transposed-lhs dot_general form, same form as the flash-attn backward).
    s = lax.dot_general(phi_t.astype(jnp.float32), theta_s[...],
                        dimension_numbers=(((0,), (0,)), ((), ())),
                        preferred_element_type=jnp.float32)         # (TK, TQ)

    # Online softmax over the KV axis; all state is lane-dense (*, TQ).
    m_prev = m_s[...]                                               # (1, TQ)
    m_new = jnp.maximum(m_prev, jnp.max(s, axis=0, keepdims=True))
    alpha = jnp.exp(m_prev - m_new)                                 # (1, TQ)
    p = jnp.exp(s - m_new)                                          # (TK, TQ) f32 exp (v5e-safe)
    # PV matmul, bf16 operands / f32 accumulate.  The ones row of g1 folds the
    # softmax row-sum into the same MXU dot: rows [0:Ci] accumulate y, row [Ci]
    # accumulates the denominator -- no separate l scratch, no cross-lane sum.
    acc_s[...] = alpha * acc_s[...] + jnp.dot(
        g1_t, p.astype(jnp.bfloat16), preferred_element_type=jnp.float32)
    m_s[...] = m_new

    @pl.when(ki == nk - 1)
    def _finalize():
        ci = theta_s.shape[0]
        acc = acc_s[...]                                            # (Ci+1, TQ)
        y = acc[:ci, :] / acc[ci:, :]                               # exact normalize (Ci, TQ)
        # output 1x1 conv back to C channels: (C, Ci) @ (Ci, TQ) -> (C, TQ)
        w_y = jnp.dot(ww_ref[...], y,
                      preferred_element_type=jnp.float32) + bw_ref[...]
        # residual add, lane-dense (C, TQ) store
        out_ref[0] = (w_y + x0q_ref[0]).astype(out_ref.dtype)


# ---------------------------------------------------------------------------
# Wrapper
# ---------------------------------------------------------------------------
def _pick_tile(n, cap):
    if n <= cap:
        return n                       # full extent -> single pass along this axis
    for t in (1024, 512, 256, 128):
        if t <= cap and n % t == 0:
            return t
    return n                           # fallback: full extent (always a legal block)


def _vmem_limit_bytes(C, Ci, tq, tk):
    blocks = 2 * 3 * C * tq * 4                       # x1q / x0 residual / out (dbl-buffered, f32)
    blocks += 2 * (2 * Ci + 2) * tk * 2               # phi + g1 tiles (dbl-buffered, bf16)
    scratch = Ci * tq * 4 + tq * 4 + (Ci + 1) * tq * 4
    temps = tk * tq * (4 + 4 + 2)                     # score f32, p f32, p bf16
    need = blocks + scratch + temps + (2 << 20)
    try:
        cap = int(pltpu.get_tpu_info().vmem_capacity_bytes)
    except Exception:
        cap = 64 << 20                                # assume the smallest (v7x) VMEM
    return int(max(32 << 20, min(2 * need, int(0.8 * cap))))


def adjusted_non_local_block(x0, x1, params, *, tq=None, tk=None):
    """x0, x1: (B, C, H, W) NCHW like the PyTorch module.  Returns z: (B, C, H, W)."""
    B, C, H, W = x0.shape
    N = H * W
    Ci = params["wg"].shape[0]
    f32 = jnp.float32

    # KV tile as large as reasonable (fewer online-softmax steps; small N -> one
    # full-row pass), query tile capped so the (TK, TQ) score tile stays modest,
    # then shrunk if needed so both v7x TensorCores get parallel grid points.
    tk = _pick_tile(N, 1024) if tk is None else tk
    tq = _pick_tile(N, 512) if tq is None else tq
    while B * (N // tq) < 2 and tq >= 256 and N % (tq // 2) == 0:
        tq //= 2
    assert N % tq == 0 and N % tk == 0, "tile sizes must divide H*W"

    # NCHW -> (B, C, N): free reshape, spatial positions land on the lane axis.
    x0_flat = x0.reshape(B, C, N)
    x1_flat = x1.reshape(B, C, N)

    # ---- prologue: hoisted phi / g projections of x0 -----------------------
    wpg = jnp.concatenate(
        [params["wp"], params["wg"], jnp.zeros((1, C), f32)], axis=0)   # (2Ci+1, C)
    bpg = jnp.concatenate(
        [params["bp"], params["bg"], jnp.ones((1, 1), f32)], axis=0)    # (2Ci+1, 1)

    tn = _pick_tile(N, 512)
    phi, g1 = pl.pallas_call(
        _kv_proj_kernel,
        out_shape=(jax.ShapeDtypeStruct((B, Ci, N), jnp.bfloat16),
                   jax.ShapeDtypeStruct((B, Ci + 1, N), jnp.bfloat16)),
        grid_spec=pltpu.PrefetchScalarGridSpec(
            num_scalar_prefetch=0,
            grid=(B, N // tn),
            in_specs=[
                pl.BlockSpec((1, C, tn), lambda b, i: (b, 0, i)),
                pl.BlockSpec((2 * Ci + 1, C), lambda b, i: (0, 0)),
                pl.BlockSpec((2 * Ci + 1, 1), lambda b, i: (0, 0)),
            ],
            out_specs=(
                pl.BlockSpec((1, Ci, tn), lambda b, i: (b, 0, i)),
                pl.BlockSpec((1, Ci + 1, tn), lambda b, i: (b, 0, i)),
            ),
        ),
        compiler_params=pltpu.CompilerParams(
            dimension_semantics=("parallel", "parallel")),
    )(x0_flat, wpg, bpg)

    # ---- attention + output projection + residual ---------------------------
    grid = (B, N // tq, N // tk)
    nq = N // tq
    cost = pl.CostEstimate(
        flops=int(2 * B * N * N * (2 * Ci + 1) + 4 * B * N * C * Ci),
        transcendentals=int(B * N * N),
        bytes_accessed=int(B * N * (3 * C * 4 + (2 * Ci + 2) * 2 * nq)),
    )

    z_flat = pl.pallas_call(
        _attn_kernel,
        out_shape=jax.ShapeDtypeStruct((B, C, N), x0.dtype),
        grid_spec=pltpu.PrefetchScalarGridSpec(
            num_scalar_prefetch=0,
            grid=grid,
            in_specs=[
                pl.BlockSpec((1, C, tq), lambda b, qi, ki: (b, 0, qi)),       # x1 (theta input)
                pl.BlockSpec((1, Ci, tk), lambda b, qi, ki: (b, 0, ki)),      # phi
                pl.BlockSpec((1, Ci + 1, tk), lambda b, qi, ki: (b, 0, ki)),  # [g; ones]
                pl.BlockSpec((1, C, tq), lambda b, qi, ki: (b, 0, qi)),       # x0 residual
                pl.BlockSpec((Ci, C), lambda b, qi, ki: (0, 0)),              # wt
                pl.BlockSpec((Ci, 1), lambda b, qi, ki: (0, 0)),              # bt
                pl.BlockSpec((C, Ci), lambda b, qi, ki: (0, 0)),              # ww
                pl.BlockSpec((C, 1), lambda b, qi, ki: (0, 0)),               # bw
            ],
            out_specs=pl.BlockSpec((1, C, tq), lambda b, qi, ki: (b, 0, qi)),
            scratch_shapes=[
                pltpu.VMEM((Ci, tq), jnp.float32),       # theta (resident per q tile)
                pltpu.VMEM((1, tq), jnp.float32),        # running max (lane-dense)
                pltpu.VMEM((Ci + 1, tq), jnp.float32),   # [PV accumulator; softmax sum]
            ],
        ),
        compiler_params=pltpu.CompilerParams(
            dimension_semantics=("parallel", "parallel", "arbitrary"),
            vmem_limit_bytes=_vmem_limit_bytes(C, Ci, tq, tk),
        ),
        cost_estimate=cost,
    )(x1_flat, phi, g1, x0_flat,
      params["wt"], params["bt"], params["ww"], params["bw"])

    return z_flat.reshape(B, C, H, W)


# ---------------------------------------------------------------------------
# Params / reference
# ---------------------------------------------------------------------------
def init_params(key, in_channels, inter_channels, zero_w=True):
    """Weights in PyTorch conv layout (out_ch, in_ch); biases as column vectors."""
    kg, kbg, kt, kbt, kp_, kbp, kw, kbw = jax.random.split(key, 8)
    s = 0.1
    p = {
        "wg": s * jax.random.normal(kg, (inter_channels, in_channels), jnp.float32),
        "bg": s * jax.random.normal(kbg, (inter_channels, 1), jnp.float32),
        "wt": s * jax.random.normal(kt, (inter_channels, in_channels), jnp.float32),
        "bt": s * jax.random.normal(kbt, (inter_channels, 1), jnp.float32),
        "wp": s * jax.random.normal(kp_, (inter_channels, in_channels), jnp.float32),
        "bp": s * jax.random.normal(kbp, (inter_channels, 1), jnp.float32),
    }
    if zero_w:
        # matches nn.init.constant_(W.weight, 0) / constant_(W.bias, 0)
        p["ww"] = jnp.zeros((in_channels, inter_channels), jnp.float32)
        p["bw"] = jnp.zeros((in_channels, 1), jnp.float32)
    else:
        p["ww"] = s * jax.random.normal(kw, (in_channels, inter_channels), jnp.float32)
        p["bw"] = s * jax.random.normal(kbw, (in_channels, 1), jnp.float32)
    return p


def reference(x0, x1, params):
    """Plain-JAX reference mirroring the PyTorch forward."""
    B, C, H, W = x0.shape
    N = H * W
    x0f = x0.reshape(B, C, N)
    x1f = x1.reshape(B, C, N)
    theta = jnp.einsum("ic,bcn->bin", params["wt"], x1f) + params["bt"]
    phi = jnp.einsum("ic,bcn->bin", params["wp"], x0f) + params["bp"]
    g = jnp.einsum("ic,bcn->bin", params["wg"], x0f) + params["bg"]
    f = jnp.einsum("bin,bim->bnm", theta, phi)
    f_div = jax.nn.softmax(f, axis=-1)
    y = jnp.einsum("bnm,bim->bni", f_div, g)
    w_y = jnp.einsum("ci,bni->bcn", params["ww"], y) + params["bw"]
    z = w_y + x0f
    return z.reshape(B, C, H, W)


if __name__ == "__main__":
    key = jax.random.PRNGKey(0)
    k0, k1, kp = jax.random.split(key, 3)

    B, C, H, W = 2, 4, 16, 16
    Ci = 2  # inter_channels

    x0 = jax.random.normal(k0, (B, C, H, W), jnp.float32)
    x1 = jax.random.normal(k1, (B, C, H, W), jnp.float32)
    # PyTorch zero-inits the W conv (z == x0 trivially); random W exercises the
    # attention + output-projection path.
    params = init_params(kp, C, Ci, zero_w=False)

    z_ref = reference(x0, x1, params)

    # Forced 128/128 tiles -> (2, 2, 2) grid: exercises the multi-step online
    # softmax accumulation across KV tiles.
    z_tiled = adjusted_non_local_block(x0, x1, params, tq=128, tk=128)
    z_tiled = jax.block_until_ready(z_tiled)
    assert z_tiled.shape == (B, C, H, W)
    assert jnp.allclose(z_tiled, z_ref, atol=2e-3, rtol=2e-3), "tiled mismatch vs reference"

    # Default tiles -> single KV step (full-row softmax fast path).
    z = adjusted_non_local_block(x0, x1, params)
    z = jax.block_until_ready(z)
    assert jnp.allclose(z, z_ref, atol=2e-3, rtol=2e-3), "mismatch vs reference"

    print("KERNEL_OK")
</pallas_src>

<mosaic_0001>
module attributes {stable_mosaic.version = 11 : i64} {
  func.func @_kv_proj_kernel(%arg0: i32, %arg1: i32, %arg2: memref<1x4x256xf32, #tpu.memory_space<vmem>>, %arg3: memref<5x4xf32, #tpu.memory_space<vmem>>, %arg4: memref<5x1xf32, #tpu.memory_space<vmem>>, %arg5: memref<1x2x256xbf16, #tpu.memory_space<vmem>>, %arg6: memref<1x3x256xbf16, #tpu.memory_space<vmem>>) attributes {dimension_semantics = [#tpu.dimension_semantics<parallel>, #tpu.dimension_semantics<parallel>], iteration_bounds = array<i64: 2, 1>, scalar_prefetch = 0 : i64, scratch_operands = 0 : i64, tpu.core_type = #tpu.core_type<tc>, window_params = [{transform_indices = @transform_0, window_bounds = array<i64: 1, 4, 256>}, {pipeline_mode = #tpu.pipeline_mode<synchronous>, transform_indices = @transform_1, window_bounds = array<i64: 5, 4>}, {pipeline_mode = #tpu.pipeline_mode<synchronous>, transform_indices = @transform_2, window_bounds = array<i64: 5, 1>}, {transform_indices = @transform_3, window_bounds = array<i64: 1, 2, 256>}, {transform_indices = @transform_4, window_bounds = array<i64: 1, 3, 256>}]} {
    %c0 = arith.constant 0 : index
    %c0_0 = arith.constant 0 : index
    %c0_1 = arith.constant 0 : index
    %0 = vector.load %arg2[%c0, %c0_0, %c0_1] : memref<1x4x256xf32, #tpu.memory_space<vmem>>, vector<1x4x256xf32>
    %1 = vector.shape_cast %0 : vector<1x4x256xf32> to vector<4x256xf32>
    %c0_2 = arith.constant 0 : index
    %c0_3 = arith.constant 0 : index
    %2 = vector.load %arg3[%c0_2, %c0_3] : memref<5x4xf32, #tpu.memory_space<vmem>>, vector<5x4xf32>
    %cst = arith.constant dense<0.000000e+00> : vector<5x256xf32>
    %3 = tpu.matmul %2, %1, %cst {dimension_numbers = #tpu.dot_dimension_numbers<[1], [0], [0], [1], [0, 0, 1, 1], [], []>} : vector<5x4xf32>, vector<4x256xf32>, vector<5x256xf32> -> vector<5x256xf32>
    %c0_4 = arith.constant 0 : index
    %c0_5 = arith.constant 0 : index
    %4 = vector.load %arg4[%c0_4, %c0_5] : memref<5x1xf32, #tpu.memory_space<vmem>>, vector<5x1xf32>
    %5 = vector.broadcast %4 : vector<5x1xf32> to vector<5x256xf32>
    %6 = arith.addf %3, %5 : vector<5x256xf32>
    %7 = vector.extract_strided_slice %6 {offsets = [0, 0], sizes = [2, 256], strides = [1, 1]} : vector<5x256xf32> to vector<2x256xf32>
    %8 = arith.truncf %7 : vector<2x256xf32> to vector<2x256xbf16>
    %c0_6 = arith.constant 0 : index
    %c0_7 = arith.constant 0 : index
    %c0_8 = arith.constant 0 : index
    %9 = vector.load %arg5[%c0_6, %c0_7, %c0_8] : memref<1x2x256xbf16, #tpu.memory_space<vmem>>, vector<1x2x256xbf16>
    %10 = vector.shape_cast %9 : vector<1x2x256xbf16> to vector<2x256xbf16>
    %11 = vector.shape_cast %8 : vector<2x256xbf16> to vector<1x2x256xbf16>
    tpu.vector_store %arg5[%c0_6, %c0_7, %c0_8], %11 {strides = array<i32>} : memref<1x2x256xbf16, #tpu.memory_space<vmem>>, vector<1x2x256xbf16>,
    %12 = vector.extract_strided_slice %6 {offsets = [2, 0], sizes = [3, 256], strides = [1, 1]} : vector<5x256xf32> to vector<3x256xf32>
    %13 = arith.truncf %12 : vector<3x256xf32> to vector<3x256xbf16>
    %c0_9 = arith.constant 0 : index
    %c0_10 = arith.constant 0 : index
    %c0_11 = arith.constant 0 : index
    %14 = vector.load %arg6[%c0_9, %c0_10, %c0_11] : memref<1x3x256xbf16, #tpu.memory_space<vmem>>, vector<1x3x256xbf16>
    %15 = vector.shape_cast %14 : vector<1x3x256xbf16> to vector<3x256xbf16>
    %16 = vector.shape_cast %13 : vector<3x256xbf16> to vector<1x3x256xbf16>
    tpu.vector_store %arg6[%c0_9, %c0_10, %c0_11], %16 {strides = array<i32>} : memref<1x3x256xbf16, #tpu.memory_space<vmem>>, vector<1x3x256xbf16>,
    return
  }
  func.func @transform_0(%arg0: i32, %arg1: i32) -> (i32, i32, i32) {
    %c0_i32 = arith.constant 0 : i32
    %c0_i32_0 = arith.constant 0 : i32
    return %arg0, %c0_i32, %arg1 : i32, i32, i32
  }
  func.func @transform_1(%arg0: i32, %arg1: i32) -> (i32, i32) {
    %c0_i32 = arith.constant 0 : i32
    %c0_i32_0 = arith.constant 0 : i32
    %c0_i32_1 = arith.constant 0 : i32
    return %c0_i32, %c0_i32_0 : i32, i32
  }
  func.func @transform_2(%arg0: i32, %arg1: i32) -> (i32, i32) {
    %c0_i32 = arith.constant 0 : i32
    %c0_i32_0 = arith.constant 0 : i32
    %c0_i32_1 = arith.constant 0 : i32
    return %c0_i32, %c0_i32_0 : i32, i32
  }
  func.func @transform_3(%arg0: i32, %arg1: i32) -> (i32, i32, i32) {
    %c0_i32 = arith.constant 0 : i32
    %c0_i32_0 = arith.constant 0 : i32
    return %arg0, %c0_i32, %arg1 : i32, i32, i32
  }
  func.func @transform_4(%arg0: i32, %arg1: i32) -> (i32, i32, i32) {
    %c0_i32 = arith.constant 0 : i32
    %c0_i32_0 = arith.constant 0 : i32
    return %arg0, %c0_i32, %arg1 : i32, i32, i32
  }
}

</mosaic_0001>

<llo_original>
// kernel: tpu_custom_call.1
$region0: #{tpu_custom_call.1}
  #allocation0 [shape = 'u32[]', space=smem, size = 0x4, offset = 0x4, fixed_abs, tag = 'smem constant byte address 0x4 - core index']
  #allocation1 [shape = 'u32[72,128]{1,0:T(1,128)}', space=vmem, size = 0x9000, scoped, tag = 'internal scratch']
  %s0 = inlined_call_operand.vmem [shape: f32[2,4,256], index: 0, kind: input, shape index: {}]
  %s1 = inlined_call_operand.vmem [shape: f32[5,4], index: 1, kind: input, shape index: {}]
  %s2 = inlined_call_operand.vmem [shape: f32[5,1], index: 2, kind: input, shape index: {}]
  %s3 = inlined_call_operand.hbm [shape: bf16[2,2,256], index: 3, kind: output, shape index: {0}]
  %s4 = inlined_call_operand.vmem [shape: bf16[2,3,256], index: 4, kind: output, shape index: {1}]
  %5 = xla_tuple %s3, %s4
  %s6 = sld [smem:[#allocation0]]
  $region53: #{tpu_custom_call.1} parent=0
    _
  %s8 = ssub.s32 1, %s6
  %s9 = scalar_select 0, %s8, %s6
  $region1: #{tpu_custom_call.1} parent=0
    #allocation2 [shape = 'u8[2048]{0}', space=vmem, size = 0x800, scoped, tag = 'output window, operand 0']
    #allocation3 [shape = 's32[2]{0}', space=sflag, size = 0x8, scoped, tag = 'scoped memory for tpu_custom_call.1']
    %10 = vsyncpa [#allocation3], 0
    %s11 = scalar_lea.sflag [#allocation3], 1
    %12 = vsyncpa %s11, 0
    loop: start=0, step=1, limit=4
    $region2: #{tpu_custom_call.1} parent=1 // loop_pre_header
      _
    $region3: #{tpu_custom_call.1} parent=1 // loop_header
      %s14 = sphi 0, %s18
      %p15 = scmp.ge.s32.totalorder %s14, 4
      %s21 = sphi 0, %s33
      %s22 = sphi 0, %s29
      %s23 = sphi 0, %s21
      %s24 = sphi 0, %s22
      %s25 = sphi 0, %s23
      %s26 = sphi 0, %s24
      %s38 = sphi 0, %s40
      %s41 = sphi 0, %s38
      %s42 = sphi 0, %s41
      %s58 = sphi 0, %s42
      %s62 = sphi 0, %s62
      %s64 = sphi 0, %s62
      %s65 = sphi 0, %s64
      %s79 = sphi 0, %s65
      %s83 = sphi 0, %s83
      %s85 = sphi 0, %s83
      %s86 = sphi 0, %s85
      %s100 = sphi 0, %s86
      %s108 = sphi 0, %s110
      %s111 = sphi 0, %s108
      %s112 = sphi 0, %s111
      %s128 = sphi 0, %s112
      %s136 = sphi 0, %s138
      %s139 = sphi 0, %s136
      %s140 = sphi 0, %s139
      %s156 = sphi 0, %s140
    $region4: #{tpu_custom_call.1} parent=1 // loop_header_branch
      %17 = sbr.rel (%p15) target = $region8
    $region5: #{tpu_custom_call.1} parent=1 // loop_body
      %s19 = ssub.s32 %s14, 1
      %s20 = ssub.s32 %s14, 2
      %s27 = sadd.s32 1, %s22
      %p28 = scmp.ge.s32.totalorder %s27, 1
      %s29 = scalar_select %p28, 0, %s27
      %s30 = sadd.s32 1, %s21
      %s31 = scalar_select %p28, %s30, %s21
      %p32 = scmp.ge.s32.totalorder %s31, 2
      %s33 = scalar_select %p32, 0, %s31
      %s34 = ssub.s32 %s21, %s33
      %s35 = ssub.s32 %s22, %s29
      %s36 = sor.u32 %s34, %s35
      %p37 = scmp.eq.s32.totalorder %s36, 0
      %s39 = sadd.s32 %s38, 1
      %s40 = scalar_select %p37, %s38, %s39
      %p43 = pneg %p37
      %p44 = scmp.eq.s32.totalorder %s14, 1
      %p45 = por %p43, %p44
      %p46 = scmp.ne.s32.totalorder %s38, %s41
      %p47 = scmp.eq.s32.totalorder %s14, 0
      %p48 = por %p46, %p47
      %p49 = scmp.ne.s32.totalorder %s38, %s41
      %p50 = scmp.eq.s32.totalorder %s19, 1
      %p51 = por %p49, %p50
      %p52 = scmp.ne.s32.totalorder %s41, %s42
      %p53 = scmp.eq.s32.totalorder %s19, 0
      %p54 = por %p52, %p53
      %p55 = scmp.ne.s32.totalorder %s41, %s42
      %p56 = scmp.eq.s32.totalorder %s20, 1
      %p57 = por %p55, %p56
      %p59 = scmp.ne.s32.totalorder %s42, %s58
      %p60 = scmp.eq.s32.totalorder %s20, 0
      %p61 = por %p59, %p60
      %s63 = sadd.s32 %s62, 1
      %p66 = scmp.eq.s32.totalorder %s14, 1
      %p67 = scmp.ne.s32.totalorder %s62, %s64
      %p68 = scmp.eq.s32.totalorder %s14, 0
      %p69 = por %p67, %p68
      %p70 = scmp.ne.s32.totalorder %s62, %s64
      %p71 = scmp.eq.s32.totalorder %s19, 1
      %p72 = por %p70, %p71
      %p73 = scmp.ne.s32.totalorder %s64, %s65
      %p74 = scmp.eq.s32.totalorder %s19, 0
      %p75 = por %p73, %p74
      %p76 = scmp.ne.s32.totalorder %s64, %s65
      %p77 = scmp.eq.s32.totalorder %s20, 1
      %p78 = por %p76, %p77
      %p80 = scmp.ne.s32.totalorder %s65, %s79
      %p81 = scmp.eq.s32.totalorder %s20, 0
      %p82 = por %p80, %p81
      %s84 = sadd.s32 %s83, 1
      %p87 = scmp.eq.s32.totalorder %s14, 1
      %p88 = scmp.ne.s32.totalorder %s83, %s85
      %p89 = scmp.eq.s32.totalorder %s14, 0
      %p90 = por %p88, %p89
      %p91 = scmp.ne.s32.totalorder %s83, %s85
      %p92 = scmp.eq.s32.totalorder %s19, 1
      %p93 = por %p91, %p92
      %p94 = scmp.ne.s32.totalorder %s85, %s86
      %p95 = scmp.eq.s32.totalorder %s19, 0
      %p96 = por %p94, %p95
      %p97 = scmp.ne.s32.totalorder %s85, %s86
      %p98 = scmp.eq.s32.totalorder %s20, 1
      %p99 = por %p97, %p98
      %p101 = scmp.ne.s32.totalorder %s86, %s100
      %p102 = scmp.eq.s32.totalorder %s20, 0
      %p103 = por %p101, %p102
      %s104 = ssub.s32 %s21, %s33
      %s105 = ssub.s32 %s22, %s29
      %s106 = sor.u32 %s104, %s105
      %p107 = scmp.eq.s32.totalorder %s106, 0
      %s109 = sadd.s32 %s108, 1
      %s110 = scalar_select %p107, %s108, %s109
      %p113 = pneg %p107
      %p114 = scmp.eq.s32.totalorder %s14, 1
      %p115 = por %p113, %p114
      %p116 = scmp.ne.s32.totalorder %s108, %s111
      %p117 = scmp.eq.s32.totalorder %s14, 0
      %p118 = por %p116, %p117
      %p119 = scmp.ne.s32.totalorder %s108, %s111
      %p120 = scmp.eq.s32.totalorder %s19, 1
      %p121 = por %p119, %p120
      %p122 = scmp.ne.s32.totalorder %s111, %s112
      %p123 = scmp.eq.s32.totalorder %s19, 0
      %p124 = por %p122, %p123
      %p125 = scmp.ne.s32.totalorder %s111, %s112
      %p126 = scmp.eq.s32.totalorder %s20, 1
      %p127 = por %p125, %p126
      %p129 = scmp.ne.s32.totalorder %s112, %s128
      %p130 = scmp.eq.s32.totalorder %s20, 0
      %p131 = por %p129, %p130
      %s132 = ssub.s32 %s21, %s33
      %s133 = ssub.s32 %s22, %s29
      %s134 = sor.u32 %s132, %s133
      %p135 = scmp.eq.s32.totalorder %s134, 0
      %s137 = sadd.s32 %s136, 1
      %s138 = scalar_select %p135, %s136, %s137
      %p141 = pneg %p135
      %p142 = scmp.eq.s32.totalorder %s14, 1
      %p143 = por %p141, %p142
      %p144 = scmp.ne.s32.totalorder %s136, %s139
      %p145 = scmp.eq.s32.totalorder %s14, 0
      %p146 = por %p144, %p145
      %p147 = scmp.ne.s32.totalorder %s136, %s139
      %p148 = scmp.eq.s32.totalorder %s19, 1
      %p149 = por %p147, %p148
      %p150 = scmp.ne.s32.totalorder %s139, %s140
      %p151 = scmp.eq.s32.totalorder %s19, 0
      %p152 = por %p150, %p151
      %p153 = scmp.ne.s32.totalorder %s139, %s140
      %p154 = scmp.eq.s32.totalorder %s20, 1
      %p155 = por %p153, %p154
      %p157 = scmp.ne.s32.totalorder %s140, %s156
      %p158 = scmp.eq.s32.totalorder %s20, 0
      %p159 = por %p157, %p158
      %p160 = scmp.le.s32.totalorder 1, %s14
      %p161 = scmp.lt.s32.totalorder %s14, 3
      %p162 = pnand %p160, %p161
      %p163 = pneg %p162
      // Predicated region
      $region9: #{tpu_custom_call.1} parent=5 // pred_check
        _
      $region10: #{tpu_custom_call.1} parent=5 // pred_check_branch
        %165 = sbr.rel (%p162) target = $region12
      $region11: #{tpu_custom_call.1} parent=5 // pred_region
        %s166 = ssub.s32 %s14, 1
        // Predicated region
        $region13: #{tpu_custom_call.1} parent=11 // pred_check
          %p167 = pneg %p75
        $region14: #{tpu_custom_call.1} parent=11 // pred_check_branch
          %169 = sbr.rel (%p167) target = $region16
        $region15: #{tpu_custom_call.1} parent=11 // pred_region
          _
        $region16: #{tpu_custom_call.1} parent=11 // pred_fallthru
          _
        // Predicated region
        $region17: #{tpu_custom_call.1} parent=11 // pred_check
          %p170 = pneg %p96
        $region18: #{tpu_custom_call.1} parent=11 // pred_check_branch
          %172 = sbr.rel (%p170) target = $region20
        $region19: #{tpu_custom_call.1} parent=11 // pred_region
          _
        $region20: #{tpu_custom_call.1} parent=11 // pred_fallthru
          _
      $region12: #{tpu_custom_call.1} parent=5 // pred_fallthru
        _
      %p173 = scmp.lt.s32.totalorder %s14, 2
      // Predicated region
      $region21: #{tpu_custom_call.1} parent=5 // pred_check
        %p174 = pneg %p173
      $region22: #{tpu_custom_call.1} parent=5 // pred_check_branch
        %176 = sbr.rel (%p174) target = $region24
      $region23: #{tpu_custom_call.1} parent=5 // pred_region
        // Predicated region
        $region25: #{tpu_custom_call.1} parent=23 // pred_check
          %p177 = pneg %p48
        $region26: #{tpu_custom_call.1} parent=23 // pred_check_branch
          %179 = sbr.rel (%p177) target = $region28
        $region27: #{tpu_custom_call.1} parent=23 // pred_region
          %s180 = smul.u32 2, %s22
          %p181 = scmp.lt.s32.totalorder %s21, 1
          %s182 = scalar_select %p181, %s21, 1
          %p183 = scmp.lt.s32.totalorder %s180, 1
          %s184 = scalar_select %p183, %s180, 1
          %s185 = smul.addr %s182, 2
          %s186 = sadd.s32 %s184, %s185
          %s187 = smul.addr %s186, 4
          %s188 = scalar_lea.vmem %s0, %s187
          %s189 = smul.u32 2, %s22
        $region28: #{tpu_custom_call.1} parent=23 // pred_fallthru
          _
      $region24: #{tpu_custom_call.1} parent=5 // pred_fallthru
        _
      %p190 = scmp.le.s32.totalorder 1, %s14
      %p191 = scmp.lt.s32.totalorder %s14, 3
      %p192 = pnand %p190, %p191
      %p193 = pneg %p192
      // Predicated region
      $region29: #{tpu_custom_call.1} parent=5 // pred_check
        _
      $region30: #{tpu_custom_call.1} parent=5 // pred_check_branch
        %195 = sbr.rel (%p192) target = $region32
      $region31: #{tpu_custom_call.1} parent=5 // pred_region
        %s196 = ssub.s32 %s14, 1
        %s197 = smul.u32 2, %s24
        %p198 = scmp.lt.s32.totalorder %s23, 1
        %s199 = scalar_select %p198, %s23, 1
        %p200 = scmp.lt.s32.totalorder %s197, 1
        %s201 = scalar_select %p200, %s197, 1
        %s202 = smul.addr %s199, 2
        %s203 = sadd.s32 %s201, %s202
        %s204 = smul.addr %s203, 4
        %s205 = scalar_lea.vmem %s0, %s204
        %p206 = pneg %p54
        %p207 = pneg %p51
        %p208 = pneg %p75
        %p209 = pneg %p72
        %p210 = pneg %p96
        %p211 = pneg %p93
        %p212 = pneg %p124
        %p213 = pneg %p121
        %s214 = sand.u32 %s111, 1
        %s215 = scalar_lea.sflag [#allocation3], %s214
        %s216 = sand.u32 %s111, 1
        %s217 = smul.addr %s216, 2
        %s218 = scalar_lea.vmem [#allocation2], %s217
        %p219 = pneg %p152
        %p220 = pneg %p149
        %s221 = smul.u32 2, %s24
        %p222 = scmp.lt.s32.totalorder %s23, 1
        %s223 = scalar_select %p222, %s23, 1
        %p224 = scmp.lt.s32.totalorder %s221, 1
        %s225 = scalar_select %p224, %s221, 1
        %s226 = smul.addr %s223, 2
        %s227 = sadd.s32 %s225, %s226
        %s228 = smul.addr %s227, 2
        %s229 = scalar_lea.vmem %s4, %s228
        %s230 = smul.u32 2, %s24
        %p231 = scmp.lt.s32.totalorder %s23, 1
        %s232 = scalar_select %p231, %s23, 1
        %p233 = scmp.lt.s32.totalorder %s230, 1
        %s234 = scalar_select %p233, %s230, 1
        %s235 = smul.addr %s232, 2
        %s236 = sadd.s32 %s234, %s235
        %s237 = smul.addr %s236, 4
        %s238 = scalar_lea.vmem %s0, %s237
        %s239 = smul.u32 2, %s24
        %s240 = smul.u32 2, %s24
        %s241 = smul.u32 2, %s24
        %p242 = scmp.lt.s32.totalorder %s23, 1
        %s243 = scalar_select %p242, %s23, 1
        %p244 = scmp.lt.s32.totalorder %s241, 1
        %s245 = scalar_select %p244, %s241, 1
        %s246 = smul.addr %s243, 2
        %s247 = sadd.s32 %s245, %s246
        %s248 = smul.addr %s247, 2
        %s249 = scalar_lea.vmem %s4, %s248
        %s250 = smul.u32 2, %s24
        %v251 = vld [vmem:[%s238] sm:$0xff]
        %v252 = vld [vmem:[%s1] sm:$0x1f]
        %v253 = vld [vmem:[%s2] sm:$0x1f]
        %255 = vset.pattern.permute.xlu0 0
        %256 = vperm.xlu0 %255, %v253
        %v257 = vpop.permute.xlu0 %256
        %260 = vst [vmem:[#allocation1] ss:$2 sm:$0xff] %v251
        %v261 = vld.sshfl [vmem:[#allocation1] sm:$0xff pattern:$0x75316420]
        %v262 = vld.sshfl [vmem:[#allocation1 + $0x8] sm:$0xff pattern:$0x75316420]
        %vm263 = vcmask 31744
        %v265 = vsel %vm263, %v252, 0
        %vm267 = vcmask 1043456
        %v268 = vsel %vm267, %v261, 0
        %v270 = vsel %vm267, %v262, 0
        %272 = vmatpush.msra.mxu0 0.0
        %273 = vmatpush.msra.mxu0 0.0
        %274 = vmatpush.msra.mxu0 0.0
        %275 = vmatpush.msra.mxu0 0.0
        %276 = vmatpush.msra.mxu0 0.0
        %277 = vmatpush.msra.mxu0 0.0
        %278 = vmatpush.msra.mxu0 0.0
        %279 = vmatpush.msra.mxu0 0.0
        %280 = vmatpush.msra.mxu0 0.0
        %281 = vmatpush.msra.mxu0 0.0
        %282 = vmatpush.msra.mxu0 0.0
        %283 = vmatpush.msra.mxu0 0.0
        %284 = vmatpush.msra.mxu0 0.0
        %285 = vmatpush.msra.mxu0 0.0
        %286 = vmatpush.msra.mxu0 0.0
        %287 = vmatpush.msra.mxu0 %v268
        %288 = vmatmul.f32.gmra.mxu0 %v265
        %v289 = vpop.f32.mrf.mxu0
        %v290 = vadd.f32 %v257, %v289
        %291 = vdwg.mxu0
        %292 = vmatpush.msra.mxu0 0.0
        %293 = vmatpush.msra.mxu0 0.0
        %294 = vmatpush.msra.mxu0 0.0
        %295 = vmatpush.msra.mxu0 0.0
        %296 = vmatpush.msra.mxu0 0.0
        %297 = vmatpush.msra.mxu0 0.0
        %298 = vmatpush.msra.mxu0 0.0
        %299 = vmatpush.msra.mxu0 0.0
        %300 = vmatpush.msra.mxu0 0.0
        %301 = vmatpush.msra.mxu0 0.0
        %302 = vmatpush.msra.mxu0 0.0
        %303 = vmatpush.msra.mxu0 0.0
        %304 = vmatpush.msra.mxu0 0.0
        %305 = vmatpush.msra.mxu0 0.0
        %306 = vmatpush.msra.mxu0 0.0
        %307 = vmatpush.msra.mxu0 %v270
        %308 = vmatmul.f32.gmra.mxu0 %v265
        %v309 = vpop.f32.mrf.mxu0
        %v310 = vadd.f32 %v257, %v309
        %311 = vdwg.mxu0
        %v312 = vpack.c.bf16 %v310, %v290
        %v314 = vrot.slane %v312, 3
        %vm315 = vcmask 1040384
        %v318 = vsel %vm315, %v312, %v314
        %320 = vst [vmem:[%s218] sm:$0x3] %v318
        %v321 = vrot.slane %v312, 2
        %vm322 = vcmask 1041408
        %v324 = vsel %vm322, %v312, %v321
        %vm326 = vcmask 1043458
        %v327 = vsel %vm326, %v312, %v321
        %v329 = vrot.slane %v327, 2
        %vm330 = vcmask 1040384
        %vm331 = vcmask 1042434
        %vm332 = vmor %vm330, %vm331
        %vm333 = vcmask 1044484
        %vm334 = vmor %vm332, %vm333
        %vm335 = vcmask 1046534
        %vm336 = vmor %vm334, %vm335
        %v337 = vrot.slane %v324, 7
        %v338 = vrot.slane %v337, 2
        %v339 = vrot.slane %v329, 7
        %v340 = vsel %vm336, %v338, %v339
        %vm342 = vcmask 1041408
        %vm343 = vsmask.f32 1280
        %vm344 = vmand %vm342, %vm343
        %vm345 = vcmask 1043458
        %vm346 = vsmask.f32 3328
        %vm347 = vmand %vm345, %vm346
        %vm348 = vmor %vm347, %vm344
        %v349 = vld [vmem:[%s249] sm:$0xf]
        %v350 = vsel %vm348, %v340, %v349
        %351 = vst [vmem:[%s249] sm:$0xf] %v350
        %s352 = sand.u32 %s111, 1
        %s353 = scalar_lea.sflag [#allocation3], %s352
        %s354 = sand.u32 %s111, 1
        %s355 = smul.addr %s354, 2
        %s356 = scalar_lea.vmem [#allocation2], %s355
        %s357 = smul.u32 2, %s24
        %p358 = scmp.lt.s32.totalorder %s23, 1
        %s359 = scalar_select %p358, %s23, 1
        %p360 = scmp.lt.s32.totalorder %s357, 1
        %s361 = scalar_select %p360, %s357, 1
        %s362 = smul.addr %s359, 2
        %s363 = sadd.s32 %s361, %s362
        %s364 = smul.addr %s363, 2
        %s365 = scalar_lea.vmem %s4, %s364
        // Predicated region
        $region33: #{tpu_custom_call.1} parent=31 // pred_check
          %p366 = pneg %p121
        $region34: #{tpu_custom_call.1} parent=31 // pred_check_branch
          %368 = sbr.rel (%p366) target = $region36
        $region35: #{tpu_custom_call.1} parent=31 // pred_region
          %s369 = smul.u32 2, %s24
          %371 = vsyncadd %s353, 0
          %s372 = smul.addr %s23, 2
          %s373 = sadd.s32 %s369, %s372
          %s374 = scalar_lea.hbm %s3, %s373
          %s376 = sshll.u32 %s356, 4
          %s377 = int_to_ptr.vmem [resolvable:$true] %s376
          %s378 = sshll.u32 %s374, 4
          %s379 = int_to_ptr.hbm [resolvable:$true] %s378
          %381 = dma.vmem_to_hbm [thread:$0]  %s377, 32, %s379, %s353
        $region36: #{tpu_custom_call.1} parent=31 // pred_fallthru
          _
        // Predicated region
        $region37: #{tpu_custom_call.1} parent=31 // pred_check
          %p382 = pneg %p149
        $region38: #{tpu_custom_call.1} parent=31 // pred_check_branch
          %384 = sbr.rel (%p382) target = $region40
        $region39: #{tpu_custom_call.1} parent=31 // pred_region
          %s385 = smul.u32 2, %s24
        $region40: #{tpu_custom_call.1} parent=31 // pred_fallthru
          _
      $region32: #{tpu_custom_call.1} parent=5 // pred_fallthru
        _
      %p386 = scmp.le.s32.totalorder 2, %s14
      // Predicated region
      $region41: #{tpu_custom_call.1} parent=5 // pred_check
        %p387 = pneg %p386
      $region42: #{tpu_custom_call.1} parent=5 // pred_check_branch
        %389 = sbr.rel (%p387) target = $region44
      $region43: #{tpu_custom_call.1} parent=5 // pred_region
        %s390 = ssub.s32 %s14, 2
        // Predicated region
        $region45: #{tpu_custom_call.1} parent=43 // pred_check
          %p391 = pneg %p127
        $region46: #{tpu_custom_call.1} parent=43 // pred_check_branch
          %393 = sbr.rel (%p391) target = $region48
        $region47: #{tpu_custom_call.1} parent=43 // pred_region
          %s394 = sand.u32 %s112, 1
          %s395 = scalar_lea.sflag [#allocation3], %s394
          %s396 = sand.u32 %s112, 1
          %s397 = smul.addr %s396, 2
          %s398 = scalar_lea.vmem [#allocation2], %s397
          %400 = dma.done %s395, 32
        $region48: #{tpu_custom_call.1} parent=43 // pred_fallthru
          _
        // Predicated region
        $region49: #{tpu_custom_call.1} parent=43 // pred_check
          %p401 = pneg %p155
        $region50: #{tpu_custom_call.1} parent=43 // pred_check_branch
          %403 = sbr.rel (%p401) target = $region52
        $region51: #{tpu_custom_call.1} parent=43 // pred_region
          %s404 = smul.u32 2, %s26
          %p405 = scmp.lt.s32.totalorder %s25, 1
          %s406 = scalar_select %p405, %s25, 1
          %p407 = scmp.lt.s32.totalorder %s404, 1
          %s408 = scalar_select %p407, %s404, 1
          %s409 = smul.addr %s406, 2
          %s410 = sadd.s32 %s408, %s409
          %s411 = smul.addr %s410, 2
          %s412 = scalar_lea.vmem %s4, %s411
        $region52: #{tpu_custom_call.1} parent=43 // pred_fallthru
          _
      $region44: #{tpu_custom_call.1} parent=5 // pred_fallthru
        _
    $region6: #{tpu_custom_call.1} parent=1 // loop_footer
      %s18 = sadd.s32 1, %s14
    $region7: #{tpu_custom_call.1} parent=1 // loop_footer_branch
      %13 = sbr.rel target = $region3
    $region8: #{tpu_custom_call.1} parent=1 // loop_exit
      _
    %413 = vsyncpa [#allocation3], 1
    %s414 = scalar_lea.sflag [#allocation3], 1
    %415 = vsyncpa %s414, 1

</llo_original>
